<compile_context>
chip_gen: v5e
topology: v5e:2x2
jax: 0.10.0
libtpu: 0.0.40
codegen_flags: <defaults>
</compile_context>

<pallas_src>
from functools import partial

import jax
import jax.numpy as jnp
import numpy as np
from jax.experimental import pallas as pl
from jax.experimental.pallas import tpu as pltpu

LN_EPS = 1e-6
_LANE_ALIGN = 128


# ----------------------------------------------------------------------------
# Tile-size selection (static, Python-level)
# ----------------------------------------------------------------------------
def _vmem_config():
    """(per-block byte budget, vmem_limit_bytes) chosen per TPU generation."""
    cap = None
    try:
        cap = getattr(pltpu.get_tpu_info(), "vmem_capacity_bytes", None)
    except Exception:
        cap = None
    if cap is None:
        cap = 64 * 1024 * 1024                      # conservative: v7x-class
    if cap <= 64 * 1024 * 1024:                     # v7x: 64 MiB physical / TC
        return 18 * 1024 * 1024, 44 * 1024 * 1024
    return 26 * 1024 * 1024, 64 * 1024 * 1024       # v5e / v6e: 128 MiB physical


def _choose_span(hw, max_span, align):
    """Largest align-multiple span <= max_span, preferring one that divides hw."""
    if hw <= max_span:
        return hw
    best = max((max_span // align) * align, align)
    t = best
    while t >= max(align, best // 2):               # bounded search, keep tiles big
        if hw % t == 0:
            return t
        t -= align
    return best


def _pick_tiles(b, c, hw, itemsize, block_budget_bytes, align=_LANE_ALIGN):
    """Pick (batch tile, spatial tile, n spatial tiles) within the VMEM budget.

    Footprint model per element of the block: 2x double-buffered input + output
    DMA buffers in the native dtype (4*itemsize) plus ~2 f32 working copies
    inside the kernel (8 bytes).
    """
    per_elem = 4 * itemsize + 8
    max_elems = max(block_budget_bytes // per_elem, c * align)
    max_span = max(align, max_elems // c)
    span = _choose_span(hw, max_span, align)

    tb = 1
    if span == hw:                                   # small image: fuse batches
        tb_cap = max(1, max_span // hw)
        for d in range(min(b, tb_cap), 0, -1):
            if b % d == 0:
                tb = d
                break
    n_hw = pl.cdiv(hw, span)
    # Keep >=2 parallel grid points when possible (v7x has 2 TensorCores).
    if b // tb == 1 and n_hw == 1 and b > 1:
        for d in range(b // 2, 0, -1):
            if b % d == 0:
                tb = d
                break
    return tb, span, n_hw


# ----------------------------------------------------------------------------
# channels_first: x (B, C, H, W), normalize over C (torch manual-LN branch)
# ----------------------------------------------------------------------------
def _ln_cfirst_kernel(x_ref, g_ref, b_ref, o_ref, *, eps):
    x = x_ref[...].astype(jnp.float32)               # (TB, C, THW)
    inv_c = 1.0 / x.shape[1]
    s1 = jnp.sum(x, axis=1, keepdims=True)           # single scan: sum & sum of sq
    s2 = jnp.sum(x * x, axis=1, keepdims=True)
    u = s1 * inv_c
    var = jnp.maximum(s2 * inv_c - u * u, 0.0)       # biased var, clamp cancellation
    inv = jax.lax.rsqrt(var + eps)                   # EUP slot
    g = g_ref[...].astype(jnp.float32)               # (C, 1) broadcast over lanes
    bb = b_ref[...].astype(jnp.float32)
    o_ref[...] = ((x - u) * inv * g + bb).astype(o_ref.dtype)


@partial(jax.jit, static_argnames=("eps",))
def layer_norm_channels_first(x, weight, bias, eps=LN_EPS):
    b, c, h, w = x.shape
    hw = h * w
    block_budget, vmem_limit = _vmem_config()
    tb, thw, n_hw = _pick_tiles(b, c, hw, x.dtype.itemsize, block_budget)

    x2 = x.reshape(b, c, hw)                          # trailing-dim merge: free
    g = weight.reshape(c, 1)
    bb = bias.reshape(c, 1)

    out = pl.pallas_call(
        partial(_ln_cfirst_kernel, eps=eps),
        out_shape=jax.ShapeDtypeStruct((b, c, hw), x.dtype),
        grid=(b // tb, n_hw),
        in_specs=[
            pl.BlockSpec((tb, c, thw), lambda i, j: (i, 0, j)),
            pl.BlockSpec((c, 1), lambda i, j: (0, 0)),
            pl.BlockSpec((c, 1), lambda i, j: (0, 0)),
        ],
        out_specs=pl.BlockSpec((tb, c, thw), lambda i, j: (i, 0, j)),
        compiler_params=pltpu.CompilerParams(
            dimension_semantics=("parallel", "parallel"),
            vmem_limit_bytes=vmem_limit),
    )(x2, g, bb)
    return out.reshape(b, c, h, w)


# ----------------------------------------------------------------------------
# channels_last: x (B, H, W, C), F.layer_norm over the last dim
# ----------------------------------------------------------------------------
def _ln_clast_kernel(x_ref, g_ref, b_ref, o_ref, *, eps):
    x = x_ref[...].astype(jnp.float32)               # (TB, THW, C)
    inv_c = 1.0 / x.shape[-1]
    s1 = jnp.sum(x, axis=-1, keepdims=True)          # lane reduce
    s2 = jnp.sum(x * x, axis=-1, keepdims=True)
    u = s1 * inv_c
    var = jnp.maximum(s2 * inv_c - u * u, 0.0)
    inv = jax.lax.rsqrt(var + eps)
    g = g_ref[...].astype(jnp.float32)               # (1, C)
    bb = b_ref[...].astype(jnp.float32)
    o_ref[...] = ((x - u) * inv * g + bb).astype(o_ref.dtype)


@partial(jax.jit, static_argnames=("eps",))
def layer_norm_channels_last(x, weight, bias, eps=LN_EPS):
    b, h, w, c = x.shape
    hw = h * w
    block_budget, vmem_limit = _vmem_config()
    # Here the spatial tile sits on sublanes (second-to-last dim); 128-alignment
    # also satisfies the required 8-alignment.
    tb, thw, n_hw = _pick_tiles(b, c, hw, x.dtype.itemsize, block_budget)
    # TODO(synk): for C < 128 the output lane dim is sparse (masked stores);
    # packing k=128/C spatial positions per lane row would make stores dense.

    x2 = x.reshape(b, hw, c)
    g = weight.reshape(1, c)
    bb = bias.reshape(1, c)

    out = pl.pallas_call(
        partial(_ln_clast_kernel, eps=eps),
        out_shape=jax.ShapeDtypeStruct((b, hw, c), x.dtype),
        grid=(b // tb, n_hw),
        in_specs=[
            pl.BlockSpec((tb, thw, c), lambda i, j: (i, j, 0)),
            pl.BlockSpec((1, c), lambda i, j: (0, 0)),
            pl.BlockSpec((1, c), lambda i, j: (0, 0)),
        ],
        out_specs=pl.BlockSpec((tb, thw, c), lambda i, j: (i, j, 0)),
        compiler_params=pltpu.CompilerParams(
            dimension_semantics=("parallel", "parallel"),
            vmem_limit_bytes=vmem_limit),
    )(x2, g, bb)
    return out.reshape(b, h, w, c)


def layer_norm(x, weight, bias, eps=LN_EPS, data_format="channels_first"):
    """Forward of the PyTorch LayerNorm module (both data formats)."""
    if data_format == "channels_first":
        return layer_norm_channels_first(x, weight, bias, eps=eps)
    elif data_format == "channels_last":
        return layer_norm_channels_last(x, weight, bias, eps=eps)
    raise NotImplementedError(data_format)


# ----------------------------------------------------------------------------
# Pure-JAX references (same math as the torch module)
# ----------------------------------------------------------------------------
def _ref_channels_first(x, weight, bias, eps=LN_EPS):
    xf = x.astype(jnp.float32)
    u = xf.mean(axis=1, keepdims=True)
    s = ((xf - u) ** 2).mean(axis=1, keepdims=True)
    xn = (xf - u) / jnp.sqrt(s + eps)
    out = weight[None, :, None, None].astype(jnp.float32) * xn \
        + bias[None, :, None, None].astype(jnp.float32)
    return out.astype(x.dtype)


def _ref_channels_last(x, weight, bias, eps=LN_EPS):
    xf = x.astype(jnp.float32)
    u = xf.mean(axis=-1, keepdims=True)
    s = ((xf - u) ** 2).mean(axis=-1, keepdims=True)
    out = (xf - u) / jnp.sqrt(s + eps) * weight.astype(jnp.float32) \
        + bias.astype(jnp.float32)
    return out.astype(x.dtype)


# ----------------------------------------------------------------------------
# Deterministic example + check
# ----------------------------------------------------------------------------
if __name__ == "__main__":
    key = jax.random.PRNGKey(0)
    kx1, kx2, kg, kb = jax.random.split(key, 4)
    B, C, H, W = 2, 32, 16, 16

    weight = 1.0 + 0.05 * jax.random.normal(kg, (C,), jnp.float32)
    bias = 0.05 * jax.random.normal(kb, (C,), jnp.float32)

    # default path: channels_first, NCHW input like torch (f32)
    x_cf = jax.random.normal(kx1, (B, C, H, W), jnp.float32)
    out_cf = jax.block_until_ready(layer_norm(x_cf, weight, bias))
    assert out_cf.dtype == x_cf.dtype
    np.testing.assert_allclose(
        np.asarray(out_cf), np.asarray(_ref_channels_first(x_cf, weight, bias)),
        atol=1e-4, rtol=1e-4)

    # channels_first with bf16 input: output stays bf16, no wrapper upcast
    x_bf = x_cf.astype(jnp.bfloat16)
    out_bf = jax.block_until_ready(layer_norm(x_bf, weight, bias))
    assert out_bf.dtype == jnp.bfloat16
    np.testing.assert_allclose(
        np.asarray(out_bf, dtype=np.float32),
        np.asarray(_ref_channels_first(x_bf, weight, bias), dtype=np.float32),
        atol=5e-2, rtol=5e-2)

    # channels_last path (F.layer_norm semantics)
    x_cl = jax.random.normal(kx2, (B, H, W, C), jnp.float32)
    out_cl = jax.block_until_ready(
        layer_norm(x_cl, weight, bias, data_format="channels_last"))
    assert out_cl.dtype == x_cl.dtype
    np.testing.assert_allclose(
        np.asarray(out_cl), np.asarray(_ref_channels_last(x_cl, weight, bias)),
        atol=1e-4, rtol=1e-4)

    print("KERNEL_OK")
</pallas_src>

<mosaic_0001>
module attributes {stable_mosaic.version = 11 : i64} {
  func.func @_ln_cfirst_kernel(%arg0: i32, %arg1: i32, %arg2: memref<1x32x256xf32, #tpu.memory_space<vmem>>, %arg3: memref<32x1xf32, #tpu.memory_space<vmem>>, %arg4: memref<32x1xf32, #tpu.memory_space<vmem>>, %arg5: memref<1x32x256xf32, #tpu.memory_space<vmem>>) attributes {dimension_semantics = [#tpu.dimension_semantics<parallel>, #tpu.dimension_semantics<parallel>], iteration_bounds = array<i64: 2, 1>, scalar_prefetch = 0 : i64, scratch_operands = 0 : i64, tpu.core_type = #tpu.core_type<tc>, window_params = [{transform_indices = @transform_0, window_bounds = array<i64: 1, 32, 256>}, {pipeline_mode = #tpu.pipeline_mode<synchronous>, transform_indices = @transform_1, window_bounds = array<i64: 32, 1>}, {pipeline_mode = #tpu.pipeline_mode<synchronous>, transform_indices = @transform_2, window_bounds = array<i64: 32, 1>}, {transform_indices = @transform_3, window_bounds = array<i64: 1, 32, 256>}]} {
    %c0 = arith.constant 0 : index
    %c0_0 = arith.constant 0 : index
    %c0_1 = arith.constant 0 : index
    %0 = vector.load %arg2[%c0, %c0_0, %c0_1] : memref<1x32x256xf32, #tpu.memory_space<vmem>>, vector<1x32x256xf32>
    %cst = arith.constant dense<0.000000e+00> : vector<1x256xf32>
    %1 = vector.multi_reduction <add>, %0, %cst [1] : vector<1x32x256xf32> to vector<1x256xf32>
    %2 = vector.shape_cast %1 : vector<1x256xf32> to vector<1x1x256xf32>
    %3 = arith.mulf %0, %0 : vector<1x32x256xf32>
    %cst_2 = arith.constant dense<0.000000e+00> : vector<1x256xf32>
    %4 = vector.multi_reduction <add>, %3, %cst_2 [1] : vector<1x32x256xf32> to vector<1x256xf32>
    %5 = vector.shape_cast %4 : vector<1x256xf32> to vector<1x1x256xf32>
    %cst_3 = arith.constant 3.125000e-02 : f32
    %6 = vector.broadcast %cst_3 : f32 to vector<1x1x256xf32>
    %7 = arith.mulf %2, %6 : vector<1x1x256xf32>
    %cst_4 = arith.constant 3.125000e-02 : f32
    %8 = vector.broadcast %cst_4 : f32 to vector<1x1x256xf32>
    %9 = arith.mulf %5, %8 : vector<1x1x256xf32>
    %10 = arith.mulf %7, %7 : vector<1x1x256xf32>
    %11 = arith.subf %9, %10 : vector<1x1x256xf32>
    %cst_5 = arith.constant 0.000000e+00 : f32
    %12 = vector.broadcast %cst_5 : f32 to vector<1x1x256xf32>
    %13 = arith.maximumf %11, %12 : vector<1x1x256xf32>
    %cst_6 = arith.constant 9.99999997E-7 : f32
    %14 = vector.broadcast %cst_6 : f32 to vector<1x1x256xf32>
    %15 = arith.addf %13, %14 : vector<1x1x256xf32>
    %16 = math.rsqrt %15 : vector<1x1x256xf32>
    %c0_7 = arith.constant 0 : index
    %c0_8 = arith.constant 0 : index
    %17 = vector.load %arg3[%c0_7, %c0_8] : memref<32x1xf32, #tpu.memory_space<vmem>>, vector<32x1xf32>
    %c0_9 = arith.constant 0 : index
    %c0_10 = arith.constant 0 : index
    %18 = vector.load %arg4[%c0_9, %c0_10] : memref<32x1xf32, #tpu.memory_space<vmem>>, vector<32x1xf32>
    %19 = vector.broadcast %7 : vector<1x1x256xf32> to vector<1x32x256xf32>
    %20 = arith.subf %0, %19 : vector<1x32x256xf32>
    %21 = vector.broadcast %16 : vector<1x1x256xf32> to vector<1x32x256xf32>
    %22 = arith.mulf %20, %21 : vector<1x32x256xf32>
    %23 = vector.shape_cast %17 : vector<32x1xf32> to vector<1x32x1xf32>
    %24 = vector.broadcast %23 : vector<1x32x1xf32> to vector<1x32x256xf32>
    %25 = arith.mulf %22, %24 : vector<1x32x256xf32>
    %26 = vector.shape_cast %18 : vector<32x1xf32> to vector<1x32x1xf32>
    %27 = vector.broadcast %26 : vector<1x32x1xf32> to vector<1x32x256xf32>
    %28 = arith.addf %25, %27 : vector<1x32x256xf32>
    %c0_11 = arith.constant 0 : index
    %c0_12 = arith.constant 0 : index
    %c0_13 = arith.constant 0 : index
    %29 = vector.load %arg5[%c0_11, %c0_12, %c0_13] : memref<1x32x256xf32, #tpu.memory_space<vmem>>, vector<1x32x256xf32>
    tpu.vector_store %arg5[%c0_11, %c0_12, %c0_13], %28 {strides = array<i32>} : memref<1x32x256xf32, #tpu.memory_space<vmem>>, vector<1x32x256xf32>,
    return
  }
  func.func @transform_0(%arg0: i32, %arg1: i32) -> (i32, i32, i32) {
    %c0_i32 = arith.constant 0 : i32
    %c0_i32_0 = arith.constant 0 : i32
    return %arg0, %c0_i32, %arg1 : i32, i32, i32
  }
  func.func @transform_1(%arg0: i32, %arg1: i32) -> (i32, i32) {
    %c0_i32 = arith.constant 0 : i32
    %c0_i32_0 = arith.constant 0 : i32
    %c0_i32_1 = arith.constant 0 : i32
    return %c0_i32, %c0_i32_0 : i32, i32
  }
  func.func @transform_2(%arg0: i32, %arg1: i32) -> (i32, i32) {
    %c0_i32 = arith.constant 0 : i32
    %c0_i32_0 = arith.constant 0 : i32
    %c0_i32_1 = arith.constant 0 : i32
    return %c0_i32, %c0_i32_0 : i32, i32
  }
  func.func @transform_3(%arg0: i32, %arg1: i32) -> (i32, i32, i32) {
    %c0_i32 = arith.constant 0 : i32
    %c0_i32_0 = arith.constant 0 : i32
    return %arg0, %c0_i32, %arg1 : i32, i32, i32
  }
}

</mosaic_0001>

<llo_original>
// kernel: layer_norm_channels_first.1
$region0: #{layer_norm_channels_first.1}
  #allocation0 [shape = 'u32[]', space=smem, size = 0x4, offset = 0x4, fixed_abs, tag = 'smem constant byte address 0x4 - core index']
  #allocation1 [shape = 'u32[72,128]{1,0:T(1,128)}', space=vmem, size = 0x9000, scoped, tag = 'internal scratch']
  %s0 = inlined_call_operand.vmem [shape: f32[2,32,256], index: 0, kind: input, shape index: {}]
  %s1 = inlined_call_operand.vmem [shape: f32[32,1], index: 1, kind: input, shape index: {}]
  %s2 = inlined_call_operand.vmem [shape: f32[32,1], index: 2, kind: input, shape index: {}]
  %s3 = inlined_call_operand.vmem [shape: f32[2,32,256], index: 3, kind: output, shape index: {}]
  %s4 = sld [smem:[#allocation0]]
  $region45: #{layer_norm_channels_first.1} parent=0
    _
  %s6 = ssub.s32 1, %s4
  %s7 = scalar_select 0, %s6, %s4
  loop: start=0, step=1, limit=4
  $region2: #{layer_norm_channels_first.1} parent=0 // loop_pre_header
    _
  $region3: #{layer_norm_channels_first.1} parent=0 // loop_header
    %s9 = sphi 0, %s13
    %p10 = scmp.ge.s32.totalorder %s9, 4
    %s16 = sphi 0, %s28
    %s17 = sphi 0, %s24
    %s18 = sphi 0, %s16
    %s19 = sphi 0, %s17
    %s20 = sphi 0, %s18
    %s21 = sphi 0, %s19
    %s33 = sphi 0, %s35
    %s36 = sphi 0, %s33
    %s37 = sphi 0, %s36
    %s53 = sphi 0, %s37
    %s57 = sphi 0, %s57
    %s59 = sphi 0, %s57
    %s60 = sphi 0, %s59
    %s74 = sphi 0, %s60
    %s78 = sphi 0, %s78
    %s80 = sphi 0, %s78
    %s81 = sphi 0, %s80
    %s95 = sphi 0, %s81
    %s103 = sphi 0, %s105
    %s106 = sphi 0, %s103
    %s107 = sphi 0, %s106
    %s123 = sphi 0, %s107
  $region4: #{layer_norm_channels_first.1} parent=0 // loop_header_branch
    %12 = sbr.rel (%p10) target = $region8
  $region5: #{layer_norm_channels_first.1} parent=0 // loop_body
    %s14 = ssub.s32 %s9, 1
    %s15 = ssub.s32 %s9, 2
    %s22 = sadd.s32 1, %s17
    %p23 = scmp.ge.s32.totalorder %s22, 1
    %s24 = scalar_select %p23, 0, %s22
    %s25 = sadd.s32 1, %s16
    %s26 = scalar_select %p23, %s25, %s16
    %p27 = scmp.ge.s32.totalorder %s26, 2
    %s28 = scalar_select %p27, 0, %s26
    %s29 = ssub.s32 %s16, %s28
    %s30 = ssub.s32 %s17, %s24
    %s31 = sor.u32 %s29, %s30
    %p32 = scmp.eq.s32.totalorder %s31, 0
    %s34 = sadd.s32 %s33, 1
    %s35 = scalar_select %p32, %s33, %s34
    %p38 = pneg %p32
    %p39 = scmp.eq.s32.totalorder %s9, 1
    %p40 = por %p38, %p39
    %p41 = scmp.ne.s32.totalorder %s33, %s36
    %p42 = scmp.eq.s32.totalorder %s9, 0
    %p43 = por %p41, %p42
    %p44 = scmp.ne.s32.totalorder %s33, %s36
    %p45 = scmp.eq.s32.totalorder %s14, 1
    %p46 = por %p44, %p45
    %p47 = scmp.ne.s32.totalorder %s36, %s37
    %p48 = scmp.eq.s32.totalorder %s14, 0
    %p49 = por %p47, %p48
    %p50 = scmp.ne.s32.totalorder %s36, %s37
    %p51 = scmp.eq.s32.totalorder %s15, 1
    %p52 = por %p50, %p51
    %p54 = scmp.ne.s32.totalorder %s37, %s53
    %p55 = scmp.eq.s32.totalorder %s15, 0
    %p56 = por %p54, %p55
    %s58 = sadd.s32 %s57, 1
    %p61 = scmp.eq.s32.totalorder %s9, 1
    %p62 = scmp.ne.s32.totalorder %s57, %s59
    %p63 = scmp.eq.s32.totalorder %s9, 0
    %p64 = por %p62, %p63
    %p65 = scmp.ne.s32.totalorder %s57, %s59
    %p66 = scmp.eq.s32.totalorder %s14, 1
    %p67 = por %p65, %p66
    %p68 = scmp.ne.s32.totalorder %s59, %s60
    %p69 = scmp.eq.s32.totalorder %s14, 0
    %p70 = por %p68, %p69
    %p71 = scmp.ne.s32.totalorder %s59, %s60
    %p72 = scmp.eq.s32.totalorder %s15, 1
    %p73 = por %p71, %p72
    %p75 = scmp.ne.s32.totalorder %s60, %s74
    %p76 = scmp.eq.s32.totalorder %s15, 0
    %p77 = por %p75, %p76
    %s79 = sadd.s32 %s78, 1
    %p82 = scmp.eq.s32.totalorder %s9, 1
    %p83 = scmp.ne.s32.totalorder %s78, %s80
    %p84 = scmp.eq.s32.totalorder %s9, 0
    %p85 = por %p83, %p84
    %p86 = scmp.ne.s32.totalorder %s78, %s80
    %p87 = scmp.eq.s32.totalorder %s14, 1
    %p88 = por %p86, %p87
    %p89 = scmp.ne.s32.totalorder %s80, %s81
    %p90 = scmp.eq.s32.totalorder %s14, 0
    %p91 = por %p89, %p90
    %p92 = scmp.ne.s32.totalorder %s80, %s81
    %p93 = scmp.eq.s32.totalorder %s15, 1
    %p94 = por %p92, %p93
    %p96 = scmp.ne.s32.totalorder %s81, %s95
    %p97 = scmp.eq.s32.totalorder %s15, 0
    %p98 = por %p96, %p97
    %s99 = ssub.s32 %s16, %s28
    %s100 = ssub.s32 %s17, %s24
    %s101 = sor.u32 %s99, %s100
    %p102 = scmp.eq.s32.totalorder %s101, 0
    %s104 = sadd.s32 %s103, 1
    %s105 = scalar_select %p102, %s103, %s104
    %p108 = pneg %p102
    %p109 = scmp.eq.s32.totalorder %s9, 1
    %p110 = por %p108, %p109
    %p111 = scmp.ne.s32.totalorder %s103, %s106
    %p112 = scmp.eq.s32.totalorder %s9, 0
    %p113 = por %p111, %p112
    %p114 = scmp.ne.s32.totalorder %s103, %s106
    %p115 = scmp.eq.s32.totalorder %s14, 1
    %p116 = por %p114, %p115
    %p117 = scmp.ne.s32.totalorder %s106, %s107
    %p118 = scmp.eq.s32.totalorder %s14, 0
    %p119 = por %p117, %p118
    %p120 = scmp.ne.s32.totalorder %s106, %s107
    %p121 = scmp.eq.s32.totalorder %s15, 1
    %p122 = por %p120, %p121
    %p124 = scmp.ne.s32.totalorder %s107, %s123
    %p125 = scmp.eq.s32.totalorder %s15, 0
    %p126 = por %p124, %p125
    %p127 = scmp.le.s32.totalorder 1, %s9
    %p128 = scmp.lt.s32.totalorder %s9, 3
    %p129 = pnand %p127, %p128
    %p130 = pneg %p129
    // Predicated region
    $region9: #{layer_norm_channels_first.1} parent=5 // pred_check
      _
    $region10: #{layer_norm_channels_first.1} parent=5 // pred_check_branch
      %132 = sbr.rel (%p129) target = $region12
    $region11: #{layer_norm_channels_first.1} parent=5 // pred_region
      %s133 = ssub.s32 %s9, 1
      // Predicated region
      $region13: #{layer_norm_channels_first.1} parent=11 // pred_check
        %p134 = pneg %p70
      $region14: #{layer_norm_channels_first.1} parent=11 // pred_check_branch
        %136 = sbr.rel (%p134) target = $region16
      $region15: #{layer_norm_channels_first.1} parent=11 // pred_region
        _
      $region16: #{layer_norm_channels_first.1} parent=11 // pred_fallthru
        _
      // Predicated region
      $region17: #{layer_norm_channels_first.1} parent=11 // pred_check
        %p137 = pneg %p91
      $region18: #{layer_norm_channels_first.1} parent=11 // pred_check_branch
        %139 = sbr.rel (%p137) target = $region20
      $region19: #{layer_norm_channels_first.1} parent=11 // pred_region
        _
      $region20: #{layer_norm_channels_first.1} parent=11 // pred_fallthru
        _
    $region12: #{layer_norm_channels_first.1} parent=5 // pred_fallthru
      _
    %p140 = scmp.lt.s32.totalorder %s9, 2
    // Predicated region
    $region21: #{layer_norm_channels_first.1} parent=5 // pred_check
      %p141 = pneg %p140
    $region22: #{layer_norm_channels_first.1} parent=5 // pred_check_branch
      %143 = sbr.rel (%p141) target = $region24
    $region23: #{layer_norm_channels_first.1} parent=5 // pred_region
      // Predicated region
      $region25: #{layer_norm_channels_first.1} parent=23 // pred_check
        %p144 = pneg %p43
      $region26: #{layer_norm_channels_first.1} parent=23 // pred_check_branch
        %146 = sbr.rel (%p144) target = $region28
      $region27: #{layer_norm_channels_first.1} parent=23 // pred_region
        %s147 = smul.u32 2, %s17
        %p148 = scmp.lt.s32.totalorder %s16, 1
        %s149 = scalar_select %p148, %s16, 1
        %p150 = scmp.lt.s32.totalorder %s147, 1
        %s151 = scalar_select %p150, %s147, 1
        %s152 = smul.addr %s149, 8
        %s153 = sadd.s32 %s151, %s152
        %s154 = smul.addr %s153, 8
        %s155 = scalar_lea.vmem %s0, %s154
        %s156 = smul.u32 2, %s17
      $region28: #{layer_norm_channels_first.1} parent=23 // pred_fallthru
        _
    $region24: #{layer_norm_channels_first.1} parent=5 // pred_fallthru
      _
    %p157 = scmp.le.s32.totalorder 1, %s9
    %p158 = scmp.lt.s32.totalorder %s9, 3
    %p159 = pnand %p157, %p158
    %p160 = pneg %p159
    // Predicated region
    $region29: #{layer_norm_channels_first.1} parent=5 // pred_check
      _
    $region30: #{layer_norm_channels_first.1} parent=5 // pred_check_branch
      %162 = sbr.rel (%p159) target = $region32
    $region31: #{layer_norm_channels_first.1} parent=5 // pred_region
      %s163 = ssub.s32 %s9, 1
      %s164 = smul.u32 2, %s19
      %p165 = scmp.lt.s32.totalorder %s18, 1
      %s166 = scalar_select %p165, %s18, 1
      %p167 = scmp.lt.s32.totalorder %s164, 1
      %s168 = scalar_select %p167, %s164, 1
      %s169 = smul.addr %s166, 8
      %s170 = sadd.s32 %s168, %s169
      %s171 = smul.addr %s170, 8
      %s172 = scalar_lea.vmem %s0, %s171
      %p173 = pneg %p49
      %p174 = pneg %p46
      %p175 = pneg %p70
      %p176 = pneg %p67
      %p177 = pneg %p91
      %p178 = pneg %p88
      %p179 = pneg %p119
      %p180 = pneg %p116
      %s181 = smul.u32 2, %s19
      %p182 = scmp.lt.s32.totalorder %s18, 1
      %s183 = scalar_select %p182, %s18, 1
      %p184 = scmp.lt.s32.totalorder %s181, 1
      %s185 = scalar_select %p184, %s181, 1
      %s186 = smul.addr %s183, 8
      %s187 = sadd.s32 %s185, %s186
      %s188 = smul.addr %s187, 8
      %s189 = scalar_lea.vmem %s3, %s188
      %s190 = smul.u32 2, %s19
      %p191 = scmp.lt.s32.totalorder %s18, 1
      %s192 = scalar_select %p191, %s18, 1
      %p193 = scmp.lt.s32.totalorder %s190, 1
      %s194 = scalar_select %p193, %s190, 1
      %s195 = smul.addr %s192, 8
      %s196 = sadd.s32 %s194, %s195
      %s197 = smul.addr %s196, 8
      %s198 = scalar_lea.vmem %s0, %s197
      %s199 = smul.u32 2, %s19
      %s200 = smul.u32 2, %s19
      %p201 = scmp.lt.s32.totalorder %s18, 1
      %s202 = scalar_select %p201, %s18, 1
      %p203 = scmp.lt.s32.totalorder %s200, 1
      %s204 = scalar_select %p203, %s200, 1
      %s205 = smul.addr %s202, 8
      %s206 = sadd.s32 %s204, %s205
      %s207 = smul.addr %s206, 8
      %s208 = scalar_lea.vmem %s3, %s207
      %s209 = smul.u32 2, %s19
      %v210 = vld [vmem:[%s198] sm:$0xff]
      %v211 = vld [vmem:[%s198 + $0x8] sm:$0xff]
      %v212 = vld [vmem:[%s198 + $0x10] sm:$0xff]
      %v213 = vld [vmem:[%s198 + $0x18] sm:$0xff]
      %v214 = vld [vmem:[%s198 + $0x20] sm:$0xff]
      %v215 = vld [vmem:[%s198 + $0x28] sm:$0xff]
      %v216 = vld [vmem:[%s198 + $0x30] sm:$0xff]
      %v217 = vld [vmem:[%s198 + $0x38] sm:$0xff]
      %v218 = vadd.f32 %v210, %v212
      %v219 = vadd.f32 %v218, %v214
      %v220 = vadd.f32 %v219, %v216
      %v221 = vrot.slane %v220, 4
      %v222 = vadd.f32 %v220, %v221
      %v223 = vrot.slane %v222, 2
      %v224 = vadd.f32 %v222, %v223
      %v225 = vrot.slane %v224, 1
      %v226 = vadd.f32 %v224, %v225
      %v227 = vadd.f32 %v211, %v213
      %v228 = vadd.f32 %v227, %v215
      %v229 = vadd.f32 %v228, %v217
      %v230 = vrot.slane %v229, 4
      %v231 = vadd.f32 %v229, %v230
      %v232 = vrot.slane %v231, 2
      %v233 = vadd.f32 %v231, %v232
      %v234 = vrot.slane %v233, 1
      %v235 = vadd.f32 %v233, %v234
      %v236 = vmul.f32 %v210, %v210
      %v237 = vmul.f32 %v211, %v211
      %v238 = vmul.f32 %v212, %v212
      %v239 = vmul.f32 %v213, %v213
      %v240 = vmul.f32 %v214, %v214
      %v241 = vmul.f32 %v215, %v215
      %v242 = vmul.f32 %v216, %v216
      %v243 = vmul.f32 %v217, %v217
      %v244 = vadd.f32 %v236, %v238
      %v245 = vadd.f32 %v244, %v240
      %v246 = vadd.f32 %v245, %v242
      %v247 = vrot.slane %v246, 4
      %v248 = vadd.f32 %v246, %v247
      %v249 = vrot.slane %v248, 2
      %v250 = vadd.f32 %v248, %v249
      %v251 = vrot.slane %v250, 1
      %v252 = vadd.f32 %v250, %v251
      %v253 = vadd.f32 %v237, %v239
      %v254 = vadd.f32 %v253, %v241
      %v255 = vadd.f32 %v254, %v243
      %v256 = vrot.slane %v255, 4
      %v257 = vadd.f32 %v255, %v256
      %v258 = vrot.slane %v257, 2
      %v259 = vadd.f32 %v257, %v258
      %v260 = vrot.slane %v259, 1
      %v261 = vadd.f32 %v259, %v260
      %v262 = vmul.f32 %v226, 0.03125
      %v263 = vmul.f32 %v235, 0.03125
      %v264 = vmul.f32 %v252, 0.03125
      %v265 = vmul.f32 %v261, 0.03125
      %v266 = vmul.f32 %v262, %v262
      %v267 = vmul.f32 %v263, %v263
      %v268 = vsub.f32 %v264, %v266
      %v269 = vsub.f32 %v265, %v267
      %v270 = vmax.f32 %v268, 0.0
      %v271 = vmax.f32 %v269, 0.0
      %v272 = vadd.f32 %v270, 1e-06
      %v273 = vadd.f32 %v271, 1e-06
      %v274 = vrsqrt.pop %v272
      %v275 = vmul.f32 %v274, %v272
      %v276 = vmul.f32 %v275, %v274
      %v277 = vmul.f32 0.5, %v276
      %v278 = vsub.f32 1.5, %v277
      %v279 = vmul.f32 %v274, %v278
      %vm280 = vweird.f32 %v272
      %vm281 = vweird.f32 %v274
      %vm282 = vmor %vm280, %vm281
      %v283 = vsel %vm282, %v274, %v279
      %v284 = vrsqrt.pop %v273
      %v285 = vmul.f32 %v284, %v273
      %v286 = vmul.f32 %v285, %v284
      %v287 = vmul.f32 0.5, %v286
      %v288 = vsub.f32 1.5, %v287
      %v289 = vmul.f32 %v284, %v288
      %vm290 = vweird.f32 %v273
      %vm291 = vweird.f32 %v284
      %vm292 = vmor %vm290, %vm291
      %v293 = vsel %vm292, %v284, %v289
      %v294 = vld [vmem:[%s1] sm:$0xff]
      %v295 = vld [vmem:[%s1 + $0x8] sm:$0xff]
      %v296 = vld [vmem:[%s1 + $0x10] sm:$0xff]
      %v297 = vld [vmem:[%s1 + $0x18] sm:$0xff]
      %v298 = vld [vmem:[%s2] sm:$0xff]
      %v299 = vld [vmem:[%s2 + $0x8] sm:$0xff]
      %v300 = vld [vmem:[%s2 + $0x10] sm:$0xff]
      %v301 = vld [vmem:[%s2 + $0x18] sm:$0xff]
      %v302 = vsub.f32 %v210, %v262
      %v303 = vsub.f32 %v211, %v263
      %v304 = vsub.f32 %v212, %v262
      %v305 = vsub.f32 %v213, %v263
      %v306 = vsub.f32 %v214, %v262
      %v307 = vsub.f32 %v215, %v263
      %v308 = vsub.f32 %v216, %v262
      %v309 = vsub.f32 %v217, %v263
      %v310 = vmul.f32 %v302, %v283
      %v311 = vmul.f32 %v303, %v293
      %v312 = vmul.f32 %v304, %v283
      %v313 = vmul.f32 %v305, %v293
      %v314 = vmul.f32 %v306, %v283
      %v315 = vmul.f32 %v307, %v293
      %v316 = vmul.f32 %v308, %v283
      %v317 = vmul.f32 %v309, %v293
      %319 = vset.pattern.permute.xlu0 0
      %320 = vperm.xlu0 %319, %v294
      %v321 = vpop.permute.xlu0 %320
      %324 = vset.pattern.permute.xlu0 0
      %325 = vperm.xlu0 %324, %v295
      %v326 = vpop.permute.xlu0 %325
      %329 = vset.pattern.permute.xlu0 0
      %330 = vperm.xlu0 %329, %v296
      %v331 = vpop.permute.xlu0 %330
      %334 = vset.pattern.permute.xlu0 0
      %335 = vperm.xlu0 %334, %v297
      %v336 = vpop.permute.xlu0 %335
      %v338 = vmul.f32 %v310, %v321
      %v339 = vmul.f32 %v311, %v321
      %v340 = vmul.f32 %v312, %v326
      %v341 = vmul.f32 %v313, %v326
      %v342 = vmul.f32 %v314, %v331
      %v343 = vmul.f32 %v315, %v331
      %v344 = vmul.f32 %v316, %v336
      %v345 = vmul.f32 %v317, %v336
      %347 = vset.pattern.permute.xlu0 0
      %348 = vperm.xlu0 %347, %v298
      %v349 = vpop.permute.xlu0 %348
      %352 = vset.pattern.permute.xlu0 0
      %353 = vperm.xlu0 %352, %v299
      %v354 = vpop.permute.xlu0 %353
      %357 = vset.pattern.permute.xlu0 0
      %358 = vperm.xlu0 %357, %v300
      %v359 = vpop.permute.xlu0 %358
      %362 = vset.pattern.permute.xlu0 0
      %363 = vperm.xlu0 %362, %v301
      %v364 = vpop.permute.xlu0 %363
      %v366 = vadd.f32 %v338, %v349
      %v367 = vadd.f32 %v339, %v349
      %v368 = vadd.f32 %v340, %v354
      %v369 = vadd.f32 %v341, %v354
      %v370 = vadd.f32 %v342, %v359
      %v371 = vadd.f32 %v343, %v359
      %v372 = vadd.f32 %v344, %v364
      %v373 = vadd.f32 %v345, %v364
      %374 = vst [vmem:[%s208] sm:$0xff] %v366
      %375 = vst [vmem:[%s208 + $0x8] sm:$0xff] %v367
      %376 = vst [vmem:[%s208 + $0x10] sm:$0xff] %v368
      %377 = vst [vmem:[%s208 + $0x18] sm:$0xff] %v369
      %378 = vst [vmem:[%s208 + $0x20] sm:$0xff] %v370
      %379 = vst [vmem:[%s208 + $0x28] sm:$0xff] %v371
      %380 = vst [vmem:[%s208 + $0x30] sm:$0xff] %v372
      %381 = vst [vmem:[%s208 + $0x38] sm:$0xff] %v373
      %s382 = smul.u32 2, %s19
      %p383 = scmp.lt.s32.totalorder %s18, 1
      %s384 = scalar_select %p383, %s18, 1
      %p385 = scmp.lt.s32.totalorder %s382, 1
      %s386 = scalar_select %p385, %s382, 1
      %s387 = smul.addr %s384, 8
      %s388 = sadd.s32 %s386, %s387
      %s389 = smul.addr %s388, 8
      %s390 = scalar_lea.vmem %s3, %s389
      // Predicated region
      $region33: #{layer_norm_channels_first.1} parent=31 // pred_check
        %p391 = pneg %p116
      $region34: #{layer_norm_channels_first.1} parent=31 // pred_check_branch
        %393 = sbr.rel (%p391) target = $region36
      $region35: #{layer_norm_channels_first.1} parent=31 // pred_region
        %s394 = smul.u32 2, %s19
      $region36: #{layer_norm_channels_first.1} parent=31 // pred_fallthru
        _
    $region32: #{layer_norm_channels_first.1} parent=5 // pred_fallthru
      _
    %p395 = scmp.le.s32.totalorder 2, %s9
    // Predicated region
    $region37: #{layer_norm_channels_first.1} parent=5 // pred_check
      %p396 = pneg %p395
    $region38: #{layer_norm_channels_first.1} parent=5 // pred_check_branch
      %398 = sbr.rel (%p396) target = $region40
    $region39: #{layer_norm_channels_first.1} parent=5 // pred_region
      %s399 = ssub.s32 %s9, 2
      // Predicated region
      $region41: #{layer_norm_channels_first.1} parent=39 // pred_check
        %p400 = pneg %p122
      $region42: #{layer_norm_channels_first.1} parent=39 // pred_check_branch
        %402 = sbr.rel (%p400) target = $region44
      $region43: #{layer_norm_channels_first.1} parent=39 // pred_region
        %s403 = smul.u32 2, %s21
        %p404 = scmp.lt.s32.totalorder %s20, 1
        %s405 = scalar_select %p404, %s20, 1
        %p406 = scmp.lt.s32.totalorder %s403, 1
        %s407 = scalar_select %p406, %s403, 1
        %s408 = smul.addr %s405, 8
        %s409 = sadd.s32 %s407, %s408
        %s410 = smul.addr %s409, 8
        %s411 = scalar_lea.vmem %s3, %s410
      $region44: #{layer_norm_channels_first.1} parent=39 // pred_fallthru
        _
    $region40: #{layer_norm_channels_first.1} parent=5 // pred_fallthru
      _
  $region6: #{layer_norm_channels_first.1} parent=0 // loop_footer
    %s13 = sadd.s32 1, %s9
  $region7: #{layer_norm_channels_first.1} parent=0 // loop_footer_branch
    %8 = sbr.rel target = $region3
  $region8: #{layer_norm_channels_first.1} parent=0 // loop_exit
    _

</llo_original>
